<compile_context>
chip_gen: v7x
topology: tpu7x:2x2x1
jax: 0.10.0
libtpu: 0.0.40
codegen_flags: <defaults>
</compile_context>

<pallas_src>
import jax
import jax.numpy as jnp
from jax.experimental import pallas as pl
from jax.experimental.pallas import tpu as pltpu


# ------------------------------ kernel ------------------------------------ #
def _add_one_kernel(x_ref, o_ref):
    # Elementwise hot path: output = input + 1 (constant cast to output dtype).
    o_ref[...] = x_ref[...] + jnp.asarray(1, dtype=o_ref.dtype)


# ------------------------------ wrapper ------------------------------------ #
_LANE = 128
_SUBLANE = 8
_COLS = 1024            # lane-dense width (multiple of 128) -> unmasked vst
_MAX_TILE_ROWS = 512    # 512 x 1024 f32 = 2 MiB / buffer; ~8 MiB double-buffered
_SMALL_FAST_PATH = 1024  # <= ~1 vreg of work: skip the kernel entirely


def gration_forward(x: jax.Array) -> jax.Array:
    """Pallas equivalent of Gration.forward: returns x + 1 with same shape/dtype."""
    n = x.size

    # Fast path: 0-d / tiny tensors -- a pallas_call would be 100% overhead.
    if n <= _SMALL_FAST_PATH:
        return x + jnp.asarray(1, dtype=x.dtype)

    # Lane-dense re-blocking: flatten, pad to a whole number of tiles,
    # reshape to (padded_rows, _COLS).
    flat = x.reshape(-1)
    rows = pl.cdiv(n, _COLS)
    tile_rows = min(_MAX_TILE_ROWS, pl.cdiv(rows, _SUBLANE) * _SUBLANE)
    padded_rows = pl.cdiv(rows, tile_rows) * tile_rows
    padded_n = padded_rows * _COLS
    if padded_n != n:
        flat = jnp.pad(flat, (0, padded_n - n))
    x2d = flat.reshape(padded_rows, _COLS)

    grid = (padded_rows // tile_rows,)

    out2d = pl.pallas_call(
        _add_one_kernel,
        out_shape=jax.ShapeDtypeStruct(x2d.shape, x2d.dtype),
        grid=grid,
        in_specs=[pl.BlockSpec((tile_rows, _COLS), lambda i: (i, 0))],
        out_specs=pl.BlockSpec((tile_rows, _COLS), lambda i: (i, 0)),
        compiler_params=pltpu.CompilerParams(
            dimension_semantics=("parallel",),
        ),
    )(x2d)

    return out2d.reshape(-1)[:n].reshape(x.shape)


# ------------------------------ self-test ---------------------------------- #
if __name__ == "__main__":
    # 1) The module's actual input: a 0-d scalar (fast path, no kernel launch).
    x_scalar = jnp.asarray(1.0, dtype=jnp.float32)
    out_scalar = jax.block_until_ready(gration_forward(x_scalar))
    assert out_scalar.shape == x_scalar.shape and out_scalar.dtype == x_scalar.dtype
    assert jnp.allclose(out_scalar, x_scalar + 1.0), (out_scalar, x_scalar + 1.0)

    # 2) A small N-D tensor (2*4*16*16 = 2048 elems) to exercise the Pallas
    #    tiled path once.
    key = jax.random.PRNGKey(0)
    x_large = jax.random.normal(key, (2, 4, 16, 16), dtype=jnp.float32)
    out_large = jax.block_until_ready(gration_forward(x_large))
    assert out_large.shape == x_large.shape and out_large.dtype == x_large.dtype
    assert jnp.allclose(out_large, x_large + 1.0)

    print("KERNEL_OK")
</pallas_src>

<mosaic_0001>
module attributes {stable_mosaic.version = 11 : i64} {
  func.func @_add_one_kernel(%arg0: i32, %arg1: memref<8x1024xf32, #tpu.memory_space<vmem>>, %arg2: memref<8x1024xf32, #tpu.memory_space<vmem>>) attributes {dimension_semantics = [#tpu.dimension_semantics<parallel>], iteration_bounds = array<i64: 1>, scalar_prefetch = 0 : i64, scratch_operands = 0 : i64, tpu.core_type = #tpu.core_type<tc>, window_params = [{transform_indices = @transform_0, window_bounds = array<i64: 8, 1024>}, {transform_indices = @transform_1, window_bounds = array<i64: 8, 1024>}]} {
    %c0 = arith.constant 0 : index
    %c0_0 = arith.constant 0 : index
    %0 = vector.load %arg1[%c0, %c0_0] : memref<8x1024xf32, #tpu.memory_space<vmem>>, vector<8x1024xf32>
    %cst = arith.constant 1.000000e+00 : f32
    %1 = vector.broadcast %cst : f32 to vector<8x1024xf32>
    %2 = arith.addf %0, %1 : vector<8x1024xf32>
    %c0_1 = arith.constant 0 : index
    %c0_2 = arith.constant 0 : index
    %3 = vector.load %arg2[%c0_1, %c0_2] : memref<8x1024xf32, #tpu.memory_space<vmem>>, vector<8x1024xf32>
    tpu.vector_store %arg2[%c0_1, %c0_2], %2 {strides = array<i32>} : memref<8x1024xf32, #tpu.memory_space<vmem>>, vector<8x1024xf32>,
    return
  }
  func.func @transform_0(%arg0: i32) -> (i32, i32) {
    %c0_i32 = arith.constant 0 : i32
    %c0_i32_0 = arith.constant 0 : i32
    return %arg0, %c0_i32 : i32, i32
  }
  func.func @transform_1(%arg0: i32) -> (i32, i32) {
    %c0_i32 = arith.constant 0 : i32
    %c0_i32_0 = arith.constant 0 : i32
    return %arg0, %c0_i32 : i32, i32
  }
}

</mosaic_0001>

<llo_original>
// kernel: tpu_custom_call.1
$region0: #{tpu_custom_call.1}
  #allocation0 [shape = 'u32[]', space=smem, size = 0x4, offset = 0x4, fixed_abs, tag = 'smem constant byte address 0x4 - core index']
  #allocation1 [shape = 'u32[144,128]{1,0:T(1,128)}', space=vmem, size = 0x12000, scoped, tag = 'internal scratch']
  %s0 = inlined_call_operand.hbm [shape: f32[8,1024], index: 0, kind: input, shape index: {}]
  %s1 = inlined_call_operand.hbm [shape: f32[8,1024], index: 1, kind: output, shape index: {}]
  %s2 = sld [smem:[#allocation0]]
  $region18: #{tpu_custom_call.1} parent=0
    _
  %s4 = ssub.s32 1, %s2
  %s5 = scalar_select 0, %s4, %s2
  $region1: #{tpu_custom_call.1} parent=0
    #allocation2 [shape = 'u8[32768]{0}', space=vmem, size = 0x8000, scoped, tag = 'input window, operand 0, single buffered']
    #allocation3 [shape = 's32[1]{0}', space=sflag, size = 0x4, scoped, tag = 'scoped memory for tpu_custom_call.1']
    #allocation4 [shape = 's32[1]{0}', space=sflag, size = 0x4, scoped, tag = 'scoped memory for tpu_custom_call.1']
    #allocation5 [shape = 'u8[32768]{0}', space=vmem, size = 0x8000, scoped, tag = 'output window, operand 0, single buffered']
    %6 = vsyncpa [#allocation3], 0
    %7 = vsyncpa [#allocation4], 0
    // Predicated region
    $region2: #{tpu_custom_call.1} parent=1 // pred_check
      _
    $region3: #{tpu_custom_call.1} parent=1 // pred_check_branch
      %9 = sbr.rel (0) target = $region5
    $region4: #{tpu_custom_call.1} parent=1 // pred_region
      %s11 = ssub.s32 1024, 1024
      %12 = vsyncadd [#allocation3], %s11
      %s14 = sshll.u32 [#allocation2], 4
      %s15 = int_to_ptr.vmem [resolvable:$true] %s14
      %17 = dma.hbm_to_vmem [thread:$0]  %s0, 1024, %s15, [#allocation3]
    $region5: #{tpu_custom_call.1} parent=1 // pred_fallthru
      _
    // Predicated region
    $region6: #{tpu_custom_call.1} parent=1 // pred_check
      _
    $region7: #{tpu_custom_call.1} parent=1 // pred_check_branch
      %19 = sbr.rel (0) target = $region9
    $region8: #{tpu_custom_call.1} parent=1 // pred_region
      %20 = dma.done [#allocation3], 1024
    $region9: #{tpu_custom_call.1} parent=1 // pred_fallthru
      _
    %v21 = vld [vmem:[#allocation2] sm:$0xff]
    %v22 = vld [vmem:[#allocation2 + $0x8] sm:$0xff]
    %v23 = vld [vmem:[#allocation2 + $0x10] sm:$0xff]
    %v24 = vld [vmem:[#allocation2 + $0x18] sm:$0xff]
    %v25 = vld [vmem:[#allocation2 + $0x20] sm:$0xff]
    %v26 = vld [vmem:[#allocation2 + $0x28] sm:$0xff]
    %v27 = vld [vmem:[#allocation2 + $0x30] sm:$0xff]
    %v28 = vld [vmem:[#allocation2 + $0x38] sm:$0xff]
    %v29 = vadd.f32 %v21, 1.0
    %v30 = vadd.f32 %v22, 1.0
    %v31 = vadd.f32 %v23, 1.0
    %v32 = vadd.f32 %v24, 1.0
    %v33 = vadd.f32 %v25, 1.0
    %v34 = vadd.f32 %v26, 1.0
    %v35 = vadd.f32 %v27, 1.0
    %v36 = vadd.f32 %v28, 1.0
    %37 = vst [vmem:[#allocation5] sm:$0xff] %v29
    %38 = vst [vmem:[#allocation5 + $0x8] sm:$0xff] %v30
    %39 = vst [vmem:[#allocation5 + $0x10] sm:$0xff] %v31
    %40 = vst [vmem:[#allocation5 + $0x18] sm:$0xff] %v32
    %41 = vst [vmem:[#allocation5 + $0x20] sm:$0xff] %v33
    %42 = vst [vmem:[#allocation5 + $0x28] sm:$0xff] %v34
    %43 = vst [vmem:[#allocation5 + $0x30] sm:$0xff] %v35
    %44 = vst [vmem:[#allocation5 + $0x38] sm:$0xff] %v36
    // Predicated region
    $region10: #{tpu_custom_call.1} parent=1 // pred_check
      _
    $region11: #{tpu_custom_call.1} parent=1 // pred_check_branch
      %46 = sbr.rel (0) target = $region13
    $region12: #{tpu_custom_call.1} parent=1 // pred_region
      %s48 = ssub.s32 1024, 1024
      %49 = vsyncadd [#allocation4], %s48
      %s51 = sshll.u32 [#allocation5], 4
      %s52 = int_to_ptr.vmem [resolvable:$true] %s51
      %54 = dma.vmem_to_hbm [thread:$0]  %s52, 1024, %s1, [#allocation4]
    $region13: #{tpu_custom_call.1} parent=1 // pred_fallthru
      _
    // Predicated region
    $region14: #{tpu_custom_call.1} parent=1 // pred_check
      _
    $region15: #{tpu_custom_call.1} parent=1 // pred_check_branch
      %56 = sbr.rel (0) target = $region17
    $region16: #{tpu_custom_call.1} parent=1 // pred_region
      %57 = dma.done [#allocation4], 1024
    $region17: #{tpu_custom_call.1} parent=1 // pred_fallthru
      _
    %58 = vsyncpa [#allocation3], 1
    %59 = vsyncpa [#allocation4], 1

</llo_original>
